<compile_context>
chip_gen: v7x
topology: tpu7x:2x2x1
jax: 0.10.0
libtpu: 0.0.40
codegen_flags: <defaults>
</compile_context>

<pallas_src>
import functools

import jax
import jax.numpy as jnp
from jax.experimental import pallas as pl
from jax.experimental.pallas import tpu as pltpu


def _make_dice_kernel(tm, lanes, k_per_slice, num_blocks, valid_rows, needs_mask):
    """Build the kernel with all sizes baked in as Python constants."""

    def kernel(p_ref, t_ref, inter_ref, union_ref):
        s = pl.program_id(0)          # parallel slice (TensorCore shard on v7x)
        k = pl.program_id(1)          # reduction step within the slice

        # Init the per-slice accumulator blocks on the first reduction step.
        @pl.when(k == 0)
        def _():
            inter_ref[...] = jnp.zeros_like(inter_ref)
            union_ref[...] = jnp.zeros_like(union_ref)

        pre = jax.nn.sigmoid(p_ref[...].astype(jnp.float32))
        tar = t_ref[...].astype(jnp.float32)

        inter_c = pre * tar           # (tm, lanes)
        union_c = pre + tar           # (tm, lanes)

        if needs_mask:
            # Mask rows past the valid range (partial last block / overhang
            # blocks of the slice split).  jnp.where never lets garbage (even
            # NaN) from the unselected branch through.
            blk = s * k_per_slice + k
            row = jax.lax.broadcasted_iota(jnp.int32, (tm, 1), 0) + blk * tm
            valid = row < valid_rows
            inter_c = jnp.where(valid, inter_c, 0.0)
            union_c = jnp.where(valid, union_c, 0.0)

        if tm % 8 == 0:
            # Fold the block down to one (8, lanes) vreg-shaped partial with
            # pure elementwise VPU adds (no XLU cross-lane reduce per step).
            inter_ref[...] += inter_c.reshape(-1, 8, lanes).sum(axis=0)
            union_ref[...] += union_c.reshape(-1, 8, lanes).sum(axis=0)
        else:
            # tm == full (small, non-multiple-of-8) row count: accumulate as-is.
            inter_ref[...] += inter_c
            union_ref[...] += union_c

    return kernel


def dice_loss(predict, target, *, tm_max=4096, lanes=128):
    assert predict.shape == target.shape, (
        "the size of predict and target must be equal."
    )
    eps = jnp.float32(1.0)  # self.epsilon = 1

    flat_p = predict.reshape(-1)
    flat_t = target.reshape(-1)
    total = flat_p.shape[0]

    rem = total % lanes
    main = total - rem

    inter = jnp.float32(0.0)
    union = jnp.float32(0.0)

    # Tiny (<128 element) tail handled in plain jnp -> no host-side jnp.pad,
    # no extra HBM pass over the bulk of the data.
    if rem:
        tail_p = flat_p[main:].astype(jnp.float32)
        tail_t = flat_t[main:].astype(jnp.float32)
        sp = jax.nn.sigmoid(tail_p)
        inter = inter + jnp.sum(sp * tail_t)
        union = union + jnp.sum(sp + tail_t)

    if main:
        rows = main // lanes
        src_p = flat_p if rem == 0 else flat_p[:main]
        src_t = flat_t if rem == 0 else flat_t[:main]
        p2 = src_p.reshape(rows, lanes)   # lane/sublane-dense global view
        t2 = src_t.reshape(rows, lanes)

        # Block rows: big (multi-MiB) tiles, multiple of 8, or the full row
        # count when the array is small.
        tm = rows if rows <= tm_max else tm_max
        num_blocks = pl.cdiv(rows, tm)
        num_slices = 2 if num_blocks >= 2 else 1       # 2-TC shard on v7x
        k_per_slice = pl.cdiv(num_blocks, num_slices)
        needs_mask = (num_slices * k_per_slice * tm) != rows
        acc_rows = 8 if tm % 8 == 0 else tm

        kernel = _make_dice_kernel(
            tm, lanes, k_per_slice, num_blocks, rows, needs_mask
        )

        def in_idx(s, k):
            # Clamp fully-out-of-range blocks (overhang of the slice split);
            # their rows are masked to zero in-kernel.
            return (jnp.minimum(s * k_per_slice + k, num_blocks - 1), 0)

        def out_idx(s, k):
            return (s, 0)  # resident accumulator block per parallel slice

        part_shape = jax.ShapeDtypeStruct(
            (num_slices * acc_rows, lanes), jnp.float32
        )

        inter_part, union_part = pl.pallas_call(
            kernel,
            out_shape=(part_shape, part_shape),
            grid_spec=pltpu.PrefetchScalarGridSpec(
                num_scalar_prefetch=0,
                grid=(num_slices, k_per_slice),
                in_specs=[
                    pl.BlockSpec((tm, lanes), in_idx),
                    pl.BlockSpec((tm, lanes), in_idx),
                ],
                out_specs=[
                    pl.BlockSpec((acc_rows, lanes), out_idx),
                    pl.BlockSpec((acc_rows, lanes), out_idx),
                ],
            ),
            compiler_params=pltpu.CompilerParams(
                dimension_semantics=("parallel", "arbitrary"),
                vmem_limit_bytes=32 * 1024 * 1024,
            ),
        )(p2, t2)

        inter = inter + jnp.sum(inter_part)
        union = union + jnp.sum(union_part)

    return jnp.float32(1.0) - jnp.float32(2.0) * (inter + eps) / (union + eps)


def dice_loss_ref(predict, target):
    num = predict.shape[0]
    eps = 1.0
    pre = jax.nn.sigmoid(predict).reshape(num, -1)
    tar = target.reshape(num, -1)
    intersection = (pre * tar).sum(-1).sum()
    union = (pre + tar).sum(-1).sum()
    return 1.0 - 2.0 * (intersection + eps) / (union + eps)


if __name__ == "__main__":
    key = jax.random.PRNGKey(0)
    kp, kt = jax.random.split(key)
    # batch=2, channels=4, spatial=16x16 (NCHW like the PyTorch module)
    predict = jax.random.normal(kp, (2, 4, 16, 16), dtype=jnp.float32)
    target = (jax.random.uniform(kt, (2, 4, 16, 16)) > 0.5).astype(jnp.float32)

    score = jax.block_until_ready(dice_loss(predict, target))
    ref = dice_loss_ref(predict, target)
    assert jnp.allclose(score, ref, atol=1e-5, rtol=1e-5), (score, ref)
    print("KERNEL_OK")
</pallas_src>

<mosaic_0001>
module attributes {stable_mosaic.version = 11 : i64} {
  func.func @kernel(%arg0: i32, %arg1: i32, %arg2: memref<16x128xf32, #tpu.memory_space<vmem>>, %arg3: memref<16x128xf32, #tpu.memory_space<vmem>>, %arg4: memref<8x128xf32, #tpu.memory_space<vmem>>, %arg5: memref<8x128xf32, #tpu.memory_space<vmem>>) attributes {dimension_semantics = [#tpu.dimension_semantics<parallel>, #tpu.dimension_semantics<arbitrary>], iteration_bounds = array<i64: 1, 1>, scalar_prefetch = 0 : i64, scratch_operands = 0 : i64, tpu.core_type = #tpu.core_type<tc>, window_params = [{transform_indices = @transform_0, window_bounds = array<i64: 16, 128>}, {transform_indices = @transform_1, window_bounds = array<i64: 16, 128>}, {transform_indices = @transform_2, window_bounds = array<i64: 8, 128>}, {transform_indices = @transform_3, window_bounds = array<i64: 8, 128>}]} {
    %c0_i32 = arith.constant 0 : i32
    %0 = arith.cmpi eq, %arg1, %c0_i32 : i32
    %1 = arith.extui %0 : i1 to i32
    %c0_i32_0 = arith.constant 0 : i32
    %2 = arith.cmpi ne, %1, %c0_i32_0 : i32
    scf.if %2 {
      %cst_14 = arith.constant 0.000000e+00 : f32
      %22 = vector.broadcast %cst_14 : f32 to vector<8x128xf32>
      %c0_15 = arith.constant 0 : index
      %c0_16 = arith.constant 0 : index
      %23 = vector.load %arg4[%c0_15, %c0_16] : memref<8x128xf32, #tpu.memory_space<vmem>>, vector<8x128xf32>
      tpu.vector_store %arg4[%c0_15, %c0_16], %22 {strides = array<i32>} : memref<8x128xf32, #tpu.memory_space<vmem>>, vector<8x128xf32>,
      %cst_17 = arith.constant 0.000000e+00 : f32
      %24 = vector.broadcast %cst_17 : f32 to vector<8x128xf32>
      %c0_18 = arith.constant 0 : index
      %c0_19 = arith.constant 0 : index
      %25 = vector.load %arg5[%c0_18, %c0_19] : memref<8x128xf32, #tpu.memory_space<vmem>>, vector<8x128xf32>
      tpu.vector_store %arg5[%c0_18, %c0_19], %24 {strides = array<i32>} : memref<8x128xf32, #tpu.memory_space<vmem>>, vector<8x128xf32>,
    } else {
    }
    %c0 = arith.constant 0 : index
    %c0_1 = arith.constant 0 : index
    %3 = vector.load %arg2[%c0, %c0_1] : memref<16x128xf32, #tpu.memory_space<vmem>>, vector<16x128xf32>
    %4 = arith.negf %3 : vector<16x128xf32>
    %5 = math.exp %4 : vector<16x128xf32>
    %cst = arith.constant 1.000000e+00 : f32
    %6 = vector.broadcast %cst : f32 to vector<16x128xf32>
    %7 = arith.addf %6, %5 : vector<16x128xf32>
    %8 = arith.divf %6, %7 : vector<16x128xf32>
    %c0_2 = arith.constant 0 : index
    %c0_3 = arith.constant 0 : index
    %9 = vector.load %arg3[%c0_2, %c0_3] : memref<16x128xf32, #tpu.memory_space<vmem>>, vector<16x128xf32>
    %10 = arith.mulf %8, %9 : vector<16x128xf32>
    %11 = arith.addf %8, %9 : vector<16x128xf32>
    %c0_4 = arith.constant 0 : index
    %c0_5 = arith.constant 0 : index
    %12 = vector.load %arg4[%c0_4, %c0_5] : memref<8x128xf32, #tpu.memory_space<vmem>>, vector<8x128xf32>
    %13 = vector.shape_cast %10 : vector<16x128xf32> to vector<2x8x128xf32>
    %cst_6 = arith.constant dense<0.000000e+00> : vector<8x128xf32>
    %14 = vector.multi_reduction <add>, %13, %cst_6 [0] : vector<2x8x128xf32> to vector<8x128xf32>
    %15 = arith.addf %12, %14 : vector<8x128xf32>
    %c0_7 = arith.constant 0 : index
    %c0_8 = arith.constant 0 : index
    %16 = vector.load %arg4[%c0_7, %c0_8] : memref<8x128xf32, #tpu.memory_space<vmem>>, vector<8x128xf32>
    tpu.vector_store %arg4[%c0_7, %c0_8], %15 {strides = array<i32>} : memref<8x128xf32, #tpu.memory_space<vmem>>, vector<8x128xf32>,
    %c0_9 = arith.constant 0 : index
    %c0_10 = arith.constant 0 : index
    %17 = vector.load %arg5[%c0_9, %c0_10] : memref<8x128xf32, #tpu.memory_space<vmem>>, vector<8x128xf32>
    %18 = vector.shape_cast %11 : vector<16x128xf32> to vector<2x8x128xf32>
    %cst_11 = arith.constant dense<0.000000e+00> : vector<8x128xf32>
    %19 = vector.multi_reduction <add>, %18, %cst_11 [0] : vector<2x8x128xf32> to vector<8x128xf32>
    %20 = arith.addf %17, %19 : vector<8x128xf32>
    %c0_12 = arith.constant 0 : index
    %c0_13 = arith.constant 0 : index
    %21 = vector.load %arg5[%c0_12, %c0_13] : memref<8x128xf32, #tpu.memory_space<vmem>>, vector<8x128xf32>
    tpu.vector_store %arg5[%c0_12, %c0_13], %20 {strides = array<i32>} : memref<8x128xf32, #tpu.memory_space<vmem>>, vector<8x128xf32>,
    return
  }
  func.func @transform_0(%arg0: i32, %arg1: i32) -> (i32, i32) {
    %c1_i32 = arith.constant 1 : i32
    %0 = arith.muli %arg0, %c1_i32 : i32
    %1 = arith.addi %0, %arg1 : i32
    %c0_i32 = arith.constant 0 : i32
    %2 = arith.minsi %1, %c0_i32 : i32
    %c0_i32_0 = arith.constant 0 : i32
    %c0_i32_1 = arith.constant 0 : i32
    return %2, %c0_i32_0 : i32, i32
  }
  func.func @transform_1(%arg0: i32, %arg1: i32) -> (i32, i32) {
    %c1_i32 = arith.constant 1 : i32
    %0 = arith.muli %arg0, %c1_i32 : i32
    %1 = arith.addi %0, %arg1 : i32
    %c0_i32 = arith.constant 0 : i32
    %2 = arith.minsi %1, %c0_i32 : i32
    %c0_i32_0 = arith.constant 0 : i32
    %c0_i32_1 = arith.constant 0 : i32
    return %2, %c0_i32_0 : i32, i32
  }
  func.func @transform_2(%arg0: i32, %arg1: i32) -> (i32, i32) {
    %c0_i32 = arith.constant 0 : i32
    %c0_i32_0 = arith.constant 0 : i32
    return %arg0, %c0_i32 : i32, i32
  }
  func.func @transform_3(%arg0: i32, %arg1: i32) -> (i32, i32) {
    %c0_i32 = arith.constant 0 : i32
    %c0_i32_0 = arith.constant 0 : i32
    return %arg0, %c0_i32 : i32, i32
  }
}

</mosaic_0001>

<llo_original>
// kernel: tpu_custom_call.1
$region0: #{tpu_custom_call.1}
  #allocation0 [shape = 'u32[]', space=smem, size = 0x4, offset = 0x4, fixed_abs, tag = 'smem constant byte address 0x4 - core index']
  #allocation1 [shape = 'u32[144,128]{1,0:T(1,128)}', space=vmem, size = 0x12000, scoped, tag = 'internal scratch']
  %s0 = inlined_call_operand.hbm [shape: f32[16,128], index: 0, kind: input, shape index: {}]
  %s1 = inlined_call_operand.hbm [shape: f32[16,128], index: 1, kind: input, shape index: {}]
  %s2 = inlined_call_operand.hbm [shape: f32[8,128], index: 2, kind: output, shape index: {0}]
  %s3 = inlined_call_operand.hbm [shape: f32[8,128], index: 3, kind: output, shape index: {1}]
  %4 = xla_tuple %s2, %s3
  %s5 = sld [smem:[#allocation0]]
  $region38: #{tpu_custom_call.1} parent=0
    _
  %s7 = ssub.s32 1, %s5
  %s8 = scalar_select 0, %s7, %s5
  $region1: #{tpu_custom_call.1} parent=0
    #allocation2 [shape = 'u8[8192]{0}', space=vmem, size = 0x2000, scoped, tag = 'input window, operand 0, single buffered']
    #allocation3 [shape = 's32[1]{0}', space=sflag, size = 0x4, scoped, tag = 'scoped memory for tpu_custom_call.1']
    #allocation4 [shape = 's32[1]{0}', space=sflag, size = 0x4, scoped, tag = 'scoped memory for tpu_custom_call.1']
    #allocation5 [shape = 'u8[8192]{0}', space=vmem, size = 0x2000, scoped, tag = 'input window, operand 1, single buffered']
    #allocation6 [shape = 's32[1]{0}', space=sflag, size = 0x4, scoped, tag = 'scoped memory for tpu_custom_call.1']
    #allocation7 [shape = 'u8[4096]{0}', space=vmem, size = 0x1000, scoped, tag = 'output window, operand 0, single buffered']
    #allocation8 [shape = 'u8[4096]{0}', space=vmem, size = 0x1000, scoped, tag = 'output window, operand 1, single buffered']
    #allocation9 [shape = 's32[1]{0}', space=sflag, size = 0x4, scoped, tag = 'scoped memory for tpu_custom_call.1']
    %9 = vsyncpa [#allocation3], 0
    %10 = vsyncpa [#allocation6], 0
    %11 = vsyncpa [#allocation4], 0
    %12 = vsyncpa [#allocation9], 0
    // Predicated region
    $region2: #{tpu_custom_call.1} parent=1 // pred_check
      _
    $region3: #{tpu_custom_call.1} parent=1 // pred_check_branch
      %14 = sbr.rel (0) target = $region5
    $region4: #{tpu_custom_call.1} parent=1 // pred_region
      %s15 = sadd.s32 0, 0
      %p16 = scmp.lt.s32.totalorder %s15, 0
      %s17 = scalar_select %p16, %s15, 0
      %s18 = smul.u32 2, %s17
      %s20 = ssub.s32 256, 256
      %21 = vsyncadd [#allocation3], %s20
      %s22 = smul.addr %s18, 128
      %s23 = scalar_lea.hbm %s0, %s22
      %s24 = sshll.u32 [#allocation2], 4
      %s25 = int_to_ptr.vmem [resolvable:$true] %s24
      %30 = dma.hbm_to_vmem [thread:$0]  %s23, 256, %s25, [#allocation3], 128, 128, 8
    $region5: #{tpu_custom_call.1} parent=1 // pred_fallthru
      _
    // Predicated region
    $region6: #{tpu_custom_call.1} parent=1 // pred_check
      _
    $region7: #{tpu_custom_call.1} parent=1 // pred_check_branch
      %32 = sbr.rel (0) target = $region9
    $region8: #{tpu_custom_call.1} parent=1 // pred_region
      %s33 = sadd.s32 0, 0
      %p34 = scmp.lt.s32.totalorder %s33, 0
      %s35 = scalar_select %p34, %s33, 0
      %s36 = smul.u32 2, %s35
      %s38 = ssub.s32 256, 256
      %39 = vsyncadd [#allocation6], %s38
      %s40 = smul.addr %s36, 128
      %s41 = scalar_lea.hbm %s1, %s40
      %s42 = sshll.u32 [#allocation5], 4
      %s43 = int_to_ptr.vmem [resolvable:$true] %s42
      %48 = dma.hbm_to_vmem [thread:$0]  %s41, 256, %s43, [#allocation6], 128, 128, 8
    $region9: #{tpu_custom_call.1} parent=1 // pred_fallthru
      _
    // Predicated region
    $region10: #{tpu_custom_call.1} parent=1 // pred_check
      _
    $region11: #{tpu_custom_call.1} parent=1 // pred_check_branch
      %50 = sbr.rel (0) target = $region13
    $region12: #{tpu_custom_call.1} parent=1 // pred_region
      %51 = dma.done [#allocation3], 256
    $region13: #{tpu_custom_call.1} parent=1 // pred_fallthru
      _
    // Predicated region
    $region14: #{tpu_custom_call.1} parent=1 // pred_check
      _
    $region15: #{tpu_custom_call.1} parent=1 // pred_check_branch
      %53 = sbr.rel (0) target = $region17
    $region16: #{tpu_custom_call.1} parent=1 // pred_region
      %54 = dma.done [#allocation6], 256
    $region17: #{tpu_custom_call.1} parent=1 // pred_fallthru
      _
    %s55 = sadd.s32 0, 0
    %p56 = scmp.lt.s32.totalorder %s55, 0
    %s57 = scalar_select %p56, %s55, 0
    %s58 = smul.u32 2, %s57
    %s59 = sadd.s32 0, 0
    %p60 = scmp.lt.s32.totalorder %s59, 0
    %s61 = scalar_select %p60, %s59, 0
    %s62 = smul.u32 2, %s61
    %p63 = scmp.eq.s32.totalorder 0, 0
    // Predicated region
    $region18: #{tpu_custom_call.1} parent=1 // pred_check
      %p64 = pneg %p63
    $region19: #{tpu_custom_call.1} parent=1 // pred_check_branch
      %66 = sbr.rel (%p64) target = $region21
    $region20: #{tpu_custom_call.1} parent=1 // pred_region
      %67 = vst [vmem:[#allocation7] sm:$0xff] 0.0
      %68 = vst [vmem:[#allocation8] sm:$0xff] 0.0
    $region21: #{tpu_custom_call.1} parent=1 // pred_fallthru
      _
    %v69 = vld [vmem:[#allocation2] sm:$0xff]
    %v70 = vld [vmem:[#allocation2 + $0x8] sm:$0xff]
    %v71 = vxor.u32 %v69, 2147483648
    %v72 = vxor.u32 %v70, 2147483648
    %v73 = vmul.f32 %v71, 1.442695
    %v74 = vpow.pop %v73
    %v75 = vmul.f32 %v72, 1.442695
    %v76 = vpow.pop %v75
    %v77 = vadd.f32 %v74, 1.0
    %v78 = vadd.f32 %v76, 1.0
    %v79 = vrcp.pop %v77
    %v80 = vmul.f32 1.0, %v79
    %v81 = vrcp.pop %v78
    %v82 = vmul.f32 1.0, %v81
    %v83 = vld [vmem:[#allocation5] sm:$0xff]
    %v84 = vld [vmem:[#allocation5 + $0x8] sm:$0xff]
    %v85 = vmul.f32 %v80, %v83
    %v86 = vmul.f32 %v82, %v84
    %v87 = vadd.f32 %v80, %v83
    %v88 = vadd.f32 %v82, %v84
    %v89 = vld [vmem:[#allocation7] sm:$0xff]
    %v90 = vadd.f32 %v85, %v86
    %v91 = vadd.f32 %v89, %v90
    %92 = vst [vmem:[#allocation7] sm:$0xff] %v91
    %v93 = vld [vmem:[#allocation8] sm:$0xff]
    %v94 = vadd.f32 %v87, %v88
    %v95 = vadd.f32 %v93, %v94
    %96 = vst [vmem:[#allocation8] sm:$0xff] %v95
    // Predicated region
    $region22: #{tpu_custom_call.1} parent=1 // pred_check
      _
    $region23: #{tpu_custom_call.1} parent=1 // pred_check_branch
      %98 = sbr.rel (0) target = $region25
    $region24: #{tpu_custom_call.1} parent=1 // pred_region
      %s100 = ssub.s32 128, 128
      %101 = vsyncadd [#allocation4], %s100
      %s103 = sshll.u32 [#allocation7], 4
      %s104 = int_to_ptr.vmem [resolvable:$true] %s103
      %106 = dma.vmem_to_hbm [thread:$0]  %s104, 128, %s2, [#allocation4]
    $region25: #{tpu_custom_call.1} parent=1 // pred_fallthru
      _
    // Predicated region
    $region26: #{tpu_custom_call.1} parent=1 // pred_check
      _
    $region27: #{tpu_custom_call.1} parent=1 // pred_check_branch
      %108 = sbr.rel (0) target = $region29
    $region28: #{tpu_custom_call.1} parent=1 // pred_region
      %s110 = ssub.s32 128, 128
      %111 = vsyncadd [#allocation9], %s110
      %s113 = sshll.u32 [#allocation8], 4
      %s114 = int_to_ptr.vmem [resolvable:$true] %s113
      %116 = dma.vmem_to_hbm [thread:$0]  %s114, 128, %s3, [#allocation9]
    $region29: #{tpu_custom_call.1} parent=1 // pred_fallthru
      _
    // Predicated region
    $region30: #{tpu_custom_call.1} parent=1 // pred_check
      _
    $region31: #{tpu_custom_call.1} parent=1 // pred_check_branch
      %118 = sbr.rel (0) target = $region33
    $region32: #{tpu_custom_call.1} parent=1 // pred_region
      %119 = dma.done [#allocation4], 128
    $region33: #{tpu_custom_call.1} parent=1 // pred_fallthru
      _
    // Predicated region
    $region34: #{tpu_custom_call.1} parent=1 // pred_check
      _
    $region35: #{tpu_custom_call.1} parent=1 // pred_check_branch
      %121 = sbr.rel (0) target = $region37
    $region36: #{tpu_custom_call.1} parent=1 // pred_region
      %122 = dma.done [#allocation9], 128
    $region37: #{tpu_custom_call.1} parent=1 // pred_fallthru
      _
    %123 = vsyncpa [#allocation3], 1
    %124 = vsyncpa [#allocation6], 1
    %125 = vsyncpa [#allocation4], 1
    %126 = vsyncpa [#allocation9], 1

</llo_original>
